<compile_context>
chip_gen: v7x
topology: tpu7x:2x2x1
jax: 0.10.0
libtpu: 0.0.40
codegen_flags: <defaults>
</compile_context>

<pallas_src>
import functools

import jax
import jax.numpy as jnp
from jax import lax
from jax.experimental import pallas as pl
from jax.experimental.pallas import tpu as pltpu

LANES = 128
SUBLANES = 8
CHUNK_ROWS = 256          # rows per inner accumulation chunk (128 KiB f32)
TARGET_BYTES = 1 << 20    # ~1 MiB per input per pipeline buffer (~86% HBM roofline)


def _round_up(v, m):
    return ((v + m - 1) // m) * m


def _soft_dice_partial_kernel(x_ref, y_ref, acc_ref, *,
                              n_valid, tile_rows, bt, num_ftiles, need_mask):
    """Accumulate per-sample partial sums (inter, sum_p, sum_t) as (8,128) slabs.

    x_ref, y_ref : (bt, tile_rows, LANES) logits / targets (native dtype).
    acc_ref      : (3, bt, SUBLANES, LANES) f32 output block, resident across
                   the feature-tile (reduction) grid axis.
    """
    j = pl.program_id(1)

    if num_ftiles > 1:
        @pl.when(j == 0)
        def _():
            acc_ref[...] = jnp.zeros_like(acc_ref)
    else:
        acc_ref[...] = jnp.zeros_like(acc_ref)

    def do_rows(row0, nrows, masked):
        x = x_ref[:, pl.ds(row0, nrows), :].astype(jnp.float32)
        t = y_ref[:, pl.ds(row0, nrows), :].astype(jnp.float32)
        # sigmoid(x) == 0.5*tanh(0.5*x) + 0.5 ; tanh runs on the EUP slot.
        p = 0.5 * jnp.tanh(0.5 * x) + 0.5
        if masked:
            # Zero out pad / stale-VMEM elements (sigmoid(garbage) and
            # sigmoid(0)=0.5 must not pollute the sums).
            row_ids = lax.broadcasted_iota(jnp.int32, (nrows, LANES), 0)
            lane_ids = lax.broadcasted_iota(jnp.int32, (nrows, LANES), 1)
            elem = (j * tile_rows + row0 + row_ids) * LANES + lane_ids
            valid = elem < n_valid
            p = jnp.where(valid, p, 0.0)
            t = jnp.where(valid, t, 0.0)
        inter = p * t
        n_fold = nrows // SUBLANES
        # Fold (bt, nrows, 128) -> (bt, 8, 128) with VALU-only vreg adds.
        acc_ref[0] += inter.reshape(bt, n_fold, SUBLANES, LANES).sum(axis=1)
        acc_ref[1] += p.reshape(bt, n_fold, SUBLANES, LANES).sum(axis=1)
        acc_ref[2] += t.reshape(bt, n_fold, SUBLANES, LANES).sum(axis=1)

    def accumulate(masked):
        n_full, rem = divmod(tile_rows, CHUNK_ROWS)
        if n_full > 1:
            def body(c, carry):
                row0 = pl.multiple_of(c * CHUNK_ROWS, CHUNK_ROWS)
                do_rows(row0, CHUNK_ROWS, masked)
                return carry
            lax.fori_loop(0, n_full, body, 0)
        elif n_full == 1:
            do_rows(0, CHUNK_ROWS, masked)
        if rem:
            do_rows(n_full * CHUNK_ROWS, rem, masked)

    if not need_mask:
        accumulate(False)
    elif num_ftiles == 1:
        accumulate(True)
    else:
        # Padding / partial-block garbage only ever lives in the LAST feature
        # tile, so interior tiles take the cheap unmasked fast path.
        @pl.when(j < num_ftiles - 1)
        def _():
            accumulate(False)

        @pl.when(j == num_ftiles - 1)
        def _():
            accumulate(True)


def soft_dice_loss(logits, targets, *, smooth=0.01):
    """Exact port of SoftDiceLoss.forward (smooth=0.01, sigmoid inside).

    Inputs may be f32 or bf16 (binary targets in bf16 are exact); no wrapper
    up-cast is performed.
    """
    assert logits.shape[0] == targets.shape[0], "batch sizes don't match"
    bs = targets.shape[0]

    x = logits.reshape(bs, -1)   # native dtype, no up-cast in the wrapper
    y = targets.reshape(bs, -1)
    d = x.shape[1]               # per-sample feature count (static)
    assert 0 < d < 2**31, "per-sample feature count must fit in int32"

    max_item = max(x.dtype.itemsize, y.dtype.itemsize)
    target_rows = max(
        CHUNK_ROWS,
        (TARGET_BYTES // (LANES * max_item)) // CHUNK_ROWS * CHUNK_ROWS)

    rows = pl.cdiv(d, LANES)
    if rows >= target_rows:
        # Large per-sample feature count: tile the feature axis per sample.
        bt = 1
        tile_rows = target_rows
        rows_arr = rows                       # no row padding; last block partial+masked
        num_ftiles = pl.cdiv(rows_arr, tile_rows)
    else:
        # Small/medium d: whole feature axis in one tile; pack samples per step.
        tile_rows = _round_up(rows, SUBLANES)
        rows_arr = tile_rows
        num_ftiles = 1
        cap = max(1, target_rows // tile_rows)
        bt = 1
        for v in range(1, min(bs, cap) + 1):  # largest divisor of bs <= cap
            if bs % v == 0:
                bt = v
    nb = bs // bt

    # Pad the flattened feature axis only when required (lane misalignment or
    # the small-path row round-up); the d % 128 == 0 common case is copy-free.
    pad_to = rows_arr * LANES
    if pad_to != d:
        x = jnp.pad(x, ((0, 0), (0, pad_to - d)))
        y = jnp.pad(y, ((0, 0), (0, pad_to - d)))
    x3 = x.reshape(bs, rows_arr, LANES)
    y3 = y.reshape(bs, rows_arr, LANES)

    # Mask only if tiled coverage exceeds the true feature count
    # (zero padding and/or stale VMEM from a partial last block).
    need_mask = (num_ftiles * tile_rows * LANES) != d

    kernel = functools.partial(
        _soft_dice_partial_kernel,
        n_valid=int(d), tile_rows=int(tile_rows), bt=int(bt),
        num_ftiles=int(num_ftiles), need_mask=bool(need_mask))

    in_bytes = bs * d * (x3.dtype.itemsize + y3.dtype.itemsize)
    out_bytes = 3 * bs * SUBLANES * LANES * 4
    cost = pl.CostEstimate(flops=6 * bs * d, transcendentals=bs * d,
                           bytes_accessed=in_bytes + out_bytes)

    acc = pl.pallas_call(
        kernel,
        out_shape=jax.ShapeDtypeStruct((3, bs, SUBLANES, LANES), jnp.float32),
        grid_spec=pltpu.PrefetchScalarGridSpec(
            num_scalar_prefetch=0,
            grid=(nb, num_ftiles),
            in_specs=[
                pl.BlockSpec((bt, tile_rows, LANES), lambda b, j: (b, j, 0)),
                pl.BlockSpec((bt, tile_rows, LANES), lambda b, j: (b, j, 0)),
            ],
            out_specs=pl.BlockSpec((3, bt, SUBLANES, LANES),
                                   lambda b, j: (0, b, 0, 0)),
        ),
        compiler_params=pltpu.CompilerParams(
            dimension_semantics=("parallel", "arbitrary"),
            vmem_limit_bytes=32 * 1024 * 1024),
        cost_estimate=cost,
    )(x3, y3)

    # Tiny epilogue in JAX: one cross-lane reduce per sample + dice ratio + mean.
    sums = jnp.sum(acc, axis=(2, 3))              # (3, bs): inter, sum_p, sum_t
    score = 2.0 * (sums[0] + smooth) / (sums[1] + sums[2] + smooth)
    return 1.0 - jnp.sum(score) / bs


def _reference(logits, targets, smooth=0.01):
    bs = targets.shape[0]
    probs = jax.nn.sigmoid(logits.astype(jnp.float32))
    m1 = probs.reshape(bs, -1)
    m2 = targets.reshape(bs, -1).astype(jnp.float32)
    inter = jnp.sum(m1 * m2, axis=1)
    score = 2.0 * (inter + smooth) / (
        jnp.sum(m1, axis=1) + jnp.sum(m2, axis=1) + smooth)
    return 1.0 - jnp.sum(score) / bs


def _check(shape, key):
    k1, k2 = jax.random.split(key)
    logits = jax.random.normal(k1, shape, dtype=jnp.float32)
    targets = (jax.random.uniform(k2, shape) > 0.5).astype(jnp.float32)
    loss = jax.block_until_ready(soft_dice_loss(logits, targets))
    ref = _reference(logits, targets)
    assert jnp.allclose(loss, ref, rtol=1e-4, atol=1e-5), (shape, loss, ref)


if __name__ == "__main__":
    key = jax.random.PRNGKey(0)
    k1, k2, k3 = jax.random.split(key, 3)

    # Primary case: [N, C, H, W] = [2, 4, 16, 16]  (aligned, batch-packed path).
    _check((2, 4, 16, 16), k1)
    # Ragged small case: exercises pad + in-kernel mask.
    _check((3, 3, 10, 10), k2)
    # Large-d case: exercises feature tiling, accumulation, last-tile-only mask.
    _check((1, 8, 256, 260), k3)

    print("KERNEL_OK")
</pallas_src>

<mosaic_0001>
module attributes {stable_mosaic.version = 11 : i64} {
  func.func @_soft_dice_partial_kernel(%arg0: i32, %arg1: i32, %arg2: memref<2x8x128xf32, #tpu.memory_space<vmem>>, %arg3: memref<2x8x128xf32, #tpu.memory_space<vmem>>, %arg4: memref<3x2x8x128xf32, #tpu.memory_space<vmem>>) attributes {dimension_semantics = [#tpu.dimension_semantics<parallel>, #tpu.dimension_semantics<arbitrary>], iteration_bounds = array<i64: 1, 1>, scalar_prefetch = 0 : i64, scratch_operands = 0 : i64, tpu.core_type = #tpu.core_type<tc>, window_params = [{transform_indices = @transform_0, window_bounds = array<i64: 2, 8, 128>}, {transform_indices = @transform_1, window_bounds = array<i64: 2, 8, 128>}, {transform_indices = @transform_2, window_bounds = array<i64: 3, 2, 8, 128>}]} {
    %cst = arith.constant 0.000000e+00 : f32
    %0 = vector.broadcast %cst : f32 to vector<3x2x8x128xf32>
    %c0 = arith.constant 0 : index
    %c0_0 = arith.constant 0 : index
    %c0_1 = arith.constant 0 : index
    %c0_2 = arith.constant 0 : index
    %1 = vector.load %arg4[%c0, %c0_0, %c0_1, %c0_2] : memref<3x2x8x128xf32, #tpu.memory_space<vmem>>, vector<3x2x8x128xf32>
    tpu.vector_store %arg4[%c0, %c0_0, %c0_1, %c0_2], %0 {strides = array<i32>} : memref<3x2x8x128xf32, #tpu.memory_space<vmem>>, vector<3x2x8x128xf32>,
    %c0_3 = arith.constant 0 : index
    %c0_4 = arith.constant 0 : index
    %c0_5 = arith.constant 0 : index
    %2 = vector.load %arg2[%c0_3, %c0_4, %c0_5] : memref<2x8x128xf32, #tpu.memory_space<vmem>>, vector<2x8x128xf32>
    %c0_6 = arith.constant 0 : index
    %c0_7 = arith.constant 0 : index
    %c0_8 = arith.constant 0 : index
    %3 = vector.load %arg3[%c0_6, %c0_7, %c0_8] : memref<2x8x128xf32, #tpu.memory_space<vmem>>, vector<2x8x128xf32>
    %cst_9 = arith.constant 5.000000e-01 : f32
    %4 = vector.broadcast %cst_9 : f32 to vector<2x8x128xf32>
    %5 = arith.mulf %4, %2 : vector<2x8x128xf32>
    %6 = math.tanh %5 : vector<2x8x128xf32>
    %cst_10 = arith.constant 5.000000e-01 : f32
    %7 = vector.broadcast %cst_10 : f32 to vector<2x8x128xf32>
    %8 = arith.mulf %7, %6 : vector<2x8x128xf32>
    %cst_11 = arith.constant 5.000000e-01 : f32
    %9 = vector.broadcast %cst_11 : f32 to vector<2x8x128xf32>
    %10 = arith.addf %8, %9 : vector<2x8x128xf32>
    %11 = arith.mulf %10, %3 : vector<2x8x128xf32>
    %c0_12 = arith.constant 0 : index
    %c0_13 = arith.constant 0 : index
    %c0_14 = arith.constant 0 : index
    %c0_15 = arith.constant 0 : index
    %12 = vector.load %arg4[%c0_12, %c0_13, %c0_14, %c0_15] : memref<3x2x8x128xf32, #tpu.memory_space<vmem>>, vector<1x2x8x128xf32>
    %13 = vector.shape_cast %12 : vector<1x2x8x128xf32> to vector<2x8x128xf32>
    %14 = vector.shape_cast %11 : vector<2x8x128xf32> to vector<2x1x8x128xf32>
    %cst_16 = arith.constant dense<0.000000e+00> : vector<2x8x128xf32>
    %15 = vector.multi_reduction <add>, %14, %cst_16 [1] : vector<2x1x8x128xf32> to vector<2x8x128xf32>
    %16 = arith.addf %13, %15 : vector<2x8x128xf32>
    %c0_17 = arith.constant 0 : index
    %c0_18 = arith.constant 0 : index
    %c0_19 = arith.constant 0 : index
    %c0_20 = arith.constant 0 : index
    %17 = vector.load %arg4[%c0_17, %c0_18, %c0_19, %c0_20] : memref<3x2x8x128xf32, #tpu.memory_space<vmem>>, vector<1x2x8x128xf32>
    %18 = vector.shape_cast %17 : vector<1x2x8x128xf32> to vector<2x8x128xf32>
    %19 = vector.shape_cast %16 : vector<2x8x128xf32> to vector<1x2x8x128xf32>
    tpu.vector_store %arg4[%c0_17, %c0_18, %c0_19, %c0_20], %19 {strides = array<i32>} : memref<3x2x8x128xf32, #tpu.memory_space<vmem>>, vector<1x2x8x128xf32>,
    %c1 = arith.constant 1 : index
    %c0_21 = arith.constant 0 : index
    %c0_22 = arith.constant 0 : index
    %c0_23 = arith.constant 0 : index
    %20 = vector.load %arg4[%c1, %c0_21, %c0_22, %c0_23] : memref<3x2x8x128xf32, #tpu.memory_space<vmem>>, vector<1x2x8x128xf32>
    %21 = vector.shape_cast %20 : vector<1x2x8x128xf32> to vector<2x8x128xf32>
    %22 = vector.shape_cast %10 : vector<2x8x128xf32> to vector<2x1x8x128xf32>
    %cst_24 = arith.constant dense<0.000000e+00> : vector<2x8x128xf32>
    %23 = vector.multi_reduction <add>, %22, %cst_24 [1] : vector<2x1x8x128xf32> to vector<2x8x128xf32>
    %24 = arith.addf %21, %23 : vector<2x8x128xf32>
    %c1_25 = arith.constant 1 : index
    %c0_26 = arith.constant 0 : index
    %c0_27 = arith.constant 0 : index
    %c0_28 = arith.constant 0 : index
    %25 = vector.load %arg4[%c1_25, %c0_26, %c0_27, %c0_28] : memref<3x2x8x128xf32, #tpu.memory_space<vmem>>, vector<1x2x8x128xf32>
    %26 = vector.shape_cast %25 : vector<1x2x8x128xf32> to vector<2x8x128xf32>
    %27 = vector.shape_cast %24 : vector<2x8x128xf32> to vector<1x2x8x128xf32>
    tpu.vector_store %arg4[%c1_25, %c0_26, %c0_27, %c0_28], %27 {strides = array<i32>} : memref<3x2x8x128xf32, #tpu.memory_space<vmem>>, vector<1x2x8x128xf32>,
    %c2 = arith.constant 2 : index
    %c0_29 = arith.constant 0 : index
    %c0_30 = arith.constant 0 : index
    %c0_31 = arith.constant 0 : index
    %28 = vector.load %arg4[%c2, %c0_29, %c0_30, %c0_31] : memref<3x2x8x128xf32, #tpu.memory_space<vmem>>, vector<1x2x8x128xf32>
    %29 = vector.shape_cast %28 : vector<1x2x8x128xf32> to vector<2x8x128xf32>
    %30 = vector.shape_cast %3 : vector<2x8x128xf32> to vector<2x1x8x128xf32>
    %cst_32 = arith.constant dense<0.000000e+00> : vector<2x8x128xf32>
    %31 = vector.multi_reduction <add>, %30, %cst_32 [1] : vector<2x1x8x128xf32> to vector<2x8x128xf32>
    %32 = arith.addf %29, %31 : vector<2x8x128xf32>
    %c2_33 = arith.constant 2 : index
    %c0_34 = arith.constant 0 : index
    %c0_35 = arith.constant 0 : index
    %c0_36 = arith.constant 0 : index
    %33 = vector.load %arg4[%c2_33, %c0_34, %c0_35, %c0_36] : memref<3x2x8x128xf32, #tpu.memory_space<vmem>>, vector<1x2x8x128xf32>
    %34 = vector.shape_cast %33 : vector<1x2x8x128xf32> to vector<2x8x128xf32>
    %35 = vector.shape_cast %32 : vector<2x8x128xf32> to vector<1x2x8x128xf32>
    tpu.vector_store %arg4[%c2_33, %c0_34, %c0_35, %c0_36], %35 {strides = array<i32>} : memref<3x2x8x128xf32, #tpu.memory_space<vmem>>, vector<1x2x8x128xf32>,
    return
  }
  func.func @transform_0(%arg0: i32, %arg1: i32) -> (i32, i32, i32) {
    %c0_i32 = arith.constant 0 : i32
    %c0_i32_0 = arith.constant 0 : i32
    return %arg0, %arg1, %c0_i32 : i32, i32, i32
  }
  func.func @transform_1(%arg0: i32, %arg1: i32) -> (i32, i32, i32) {
    %c0_i32 = arith.constant 0 : i32
    %c0_i32_0 = arith.constant 0 : i32
    return %arg0, %arg1, %c0_i32 : i32, i32, i32
  }
  func.func @transform_2(%arg0: i32, %arg1: i32) -> (i32, i32, i32, i32) {
    %c0_i32 = arith.constant 0 : i32
    %c0_i32_0 = arith.constant 0 : i32
    %c0_i32_1 = arith.constant 0 : i32
    %c0_i32_2 = arith.constant 0 : i32
    return %c0_i32, %arg0, %c0_i32_0, %c0_i32_1 : i32, i32, i32, i32
  }
}

</mosaic_0001>

<llo_original>
// kernel: tpu_custom_call.1
$region0: #{tpu_custom_call.1}
  #allocation0 [shape = 'u32[]', space=smem, size = 0x4, offset = 0x4, fixed_abs, tag = 'smem constant byte address 0x4 - core index']
  #allocation1 [shape = 'u32[144,128]{1,0:T(1,128)}', space=vmem, size = 0x12000, scoped, tag = 'internal scratch']
  %s0 = inlined_call_operand.hbm [shape: f32[2,8,128], index: 0, kind: input, shape index: {}]
  %s1 = inlined_call_operand.hbm [shape: f32[2,8,128], index: 1, kind: input, shape index: {}]
  %s2 = inlined_call_operand.hbm [shape: f32[3,2,8,128], index: 2, kind: output, shape index: {}]
  %s3 = sld [smem:[#allocation0]]
  $region26: #{tpu_custom_call.1} parent=0
    _
  %s5 = ssub.s32 1, %s3
  %s6 = scalar_select 0, %s5, %s3
  $region1: #{tpu_custom_call.1} parent=0
    #allocation2 [shape = 'u8[8192]{0}', space=vmem, size = 0x2000, scoped, tag = 'input window, operand 0, single buffered']
    #allocation3 [shape = 's32[1]{0}', space=sflag, size = 0x4, scoped, tag = 'scoped memory for tpu_custom_call.1']
    #allocation4 [shape = 's32[1]{0}', space=sflag, size = 0x4, scoped, tag = 'scoped memory for tpu_custom_call.1']
    #allocation5 [shape = 'u8[8192]{0}', space=vmem, size = 0x2000, scoped, tag = 'input window, operand 1, single buffered']
    #allocation6 [shape = 's32[1]{0}', space=sflag, size = 0x4, scoped, tag = 'scoped memory for tpu_custom_call.1']
    #allocation7 [shape = 'u8[24576]{0}', space=vmem, size = 0x6000, scoped, tag = 'output window, operand 0, single buffered']
    %7 = vsyncpa [#allocation3], 0
    %8 = vsyncpa [#allocation6], 0
    %9 = vsyncpa [#allocation4], 0
    // Predicated region
    $region2: #{tpu_custom_call.1} parent=1 // pred_check
      _
    $region3: #{tpu_custom_call.1} parent=1 // pred_check_branch
      %11 = sbr.rel (0) target = $region5
    $region4: #{tpu_custom_call.1} parent=1 // pred_region
      %s13 = ssub.s32 256, 256
      %14 = vsyncadd [#allocation3], %s13
      %s15 = sshll.u32 [#allocation2], 4
      %s16 = int_to_ptr.vmem [resolvable:$true] %s15
      %21 = dma.hbm_to_vmem [thread:$0]  %s0, 256, %s16, [#allocation3], 128, 128, 8
    $region5: #{tpu_custom_call.1} parent=1 // pred_fallthru
      _
    // Predicated region
    $region6: #{tpu_custom_call.1} parent=1 // pred_check
      _
    $region7: #{tpu_custom_call.1} parent=1 // pred_check_branch
      %23 = sbr.rel (0) target = $region9
    $region8: #{tpu_custom_call.1} parent=1 // pred_region
      %s25 = ssub.s32 256, 256
      %26 = vsyncadd [#allocation6], %s25
      %s27 = sshll.u32 [#allocation5], 4
      %s28 = int_to_ptr.vmem [resolvable:$true] %s27
      %33 = dma.hbm_to_vmem [thread:$0]  %s1, 256, %s28, [#allocation6], 128, 128, 8
    $region9: #{tpu_custom_call.1} parent=1 // pred_fallthru
      _
    // Predicated region
    $region10: #{tpu_custom_call.1} parent=1 // pred_check
      _
    $region11: #{tpu_custom_call.1} parent=1 // pred_check_branch
      %35 = sbr.rel (0) target = $region13
    $region12: #{tpu_custom_call.1} parent=1 // pred_region
      %36 = dma.done [#allocation3], 256
    $region13: #{tpu_custom_call.1} parent=1 // pred_fallthru
      _
    // Predicated region
    $region14: #{tpu_custom_call.1} parent=1 // pred_check
      _
    $region15: #{tpu_custom_call.1} parent=1 // pred_check_branch
      %38 = sbr.rel (0) target = $region17
    $region16: #{tpu_custom_call.1} parent=1 // pred_region
      %39 = dma.done [#allocation6], 256
    $region17: #{tpu_custom_call.1} parent=1 // pred_fallthru
      _
    %40 = vst [vmem:[#allocation7] sm:$0xff] 0.0
    %41 = vst [vmem:[#allocation7 + $0x8] sm:$0xff] 0.0
    %42 = vst [vmem:[#allocation7 + $0x10] sm:$0xff] 0.0
    %43 = vst [vmem:[#allocation7 + $0x18] sm:$0xff] 0.0
    %44 = vst [vmem:[#allocation7 + $0x20] sm:$0xff] 0.0
    %45 = vst [vmem:[#allocation7 + $0x28] sm:$0xff] 0.0
    %v46 = vld [vmem:[#allocation2] sm:$0xff]
    %v47 = vld [vmem:[#allocation2 + $0x8] sm:$0xff]
    %v48 = vld [vmem:[#allocation5] sm:$0xff]
    %v49 = vld [vmem:[#allocation5 + $0x8] sm:$0xff]
    %v50 = vmul.f32 %v46, 0.5
    %v51 = vmul.f32 %v47, 0.5
    %v52 = vtanh.pop %v50
    %v53 = vtanh.pop %v51
    %v54 = vmul.f32 %v52, 0.5
    %v55 = vmul.f32 %v53, 0.5
    %v56 = vadd.f32 %v54, 0.5
    %v57 = vadd.f32 %v55, 0.5
    %v58 = vmul.f32 %v56, %v48
    %v59 = vmul.f32 %v57, %v49
    %v60 = vld [vmem:[#allocation7] sm:$0xff]
    %v61 = vld [vmem:[#allocation7 + $0x8] sm:$0xff]
    %v62 = vadd.f32 %v58, 0.0
    %v63 = vadd.f32 %v59, 0.0
    %v64 = vadd.f32 %v60, %v62
    %v65 = vadd.f32 %v61, %v63
    %66 = vst [vmem:[#allocation7] sm:$0xff] %v64
    %67 = vst [vmem:[#allocation7 + $0x8] sm:$0xff] %v65
    %s68 = scalar_lea.vmem [#allocation7], 16
    %v69 = vld [vmem:[%s68] sm:$0xff]
    %v70 = vld [vmem:[%s68 + $0x8] sm:$0xff]
    %v71 = vadd.f32 %v56, 0.0
    %v72 = vadd.f32 %v57, 0.0
    %v73 = vadd.f32 %v69, %v71
    %v74 = vadd.f32 %v70, %v72
    %75 = vst [vmem:[%s68] sm:$0xff] %v73
    %76 = vst [vmem:[%s68 + $0x8] sm:$0xff] %v74
    %s77 = scalar_lea.vmem [#allocation7], 32
    %v78 = vld [vmem:[%s77] sm:$0xff]
    %v79 = vld [vmem:[%s77 + $0x8] sm:$0xff]
    %v80 = vadd.f32 %v48, 0.0
    %v81 = vadd.f32 %v49, 0.0
    %v82 = vadd.f32 %v78, %v80
    %v83 = vadd.f32 %v79, %v81
    %84 = vst [vmem:[%s77] sm:$0xff] %v82
    %85 = vst [vmem:[%s77 + $0x8] sm:$0xff] %v83
    // Predicated region
    $region18: #{tpu_custom_call.1} parent=1 // pred_check
      _
    $region19: #{tpu_custom_call.1} parent=1 // pred_check_branch
      %87 = sbr.rel (0) target = $region21
    $region20: #{tpu_custom_call.1} parent=1 // pred_region
      %s89 = ssub.s32 768, 768
      %90 = vsyncadd [#allocation4], %s89
      %s91 = sshll.u32 [#allocation7], 4
      %s92 = int_to_ptr.vmem [resolvable:$true] %s91
      %97 = dma.vmem_to_hbm [thread:$0]  %s92, 768, %s2, [#allocation4], 128, 128, 8
    $region21: #{tpu_custom_call.1} parent=1 // pred_fallthru
      _
    // Predicated region
    $region22: #{tpu_custom_call.1} parent=1 // pred_check
      _
    $region23: #{tpu_custom_call.1} parent=1 // pred_check_branch
      %99 = sbr.rel (0) target = $region25
    $region24: #{tpu_custom_call.1} parent=1 // pred_region
      %100 = dma.done [#allocation4], 768
    $region25: #{tpu_custom_call.1} parent=1 // pred_fallthru
      _
    %101 = vsyncpa [#allocation3], 1
    %102 = vsyncpa [#allocation6], 1
    %103 = vsyncpa [#allocation4], 1

</llo_original>
